<compile_context>
chip_gen: v6e
topology: v6e:2x2x1
jax: 0.10.0
libtpu: 0.0.40
codegen_flags: <defaults>
</compile_context>

<pallas_src>
import functools

import jax
import jax.numpy as jnp
from jax.experimental import pallas as pl
from jax.experimental.pallas import tpu as pltpu

IN_FEATURES = 24
OUT_FEATURES = 9

DEFAULT_BATCH_TILE = 8192   # rows per grid step; multiple of 128
SINGLE_BLOCK_MAX = 1024     # at/below this, one full-array block (grid = 1)


def linear_kernel(x_ref, wt_ref, b_ref, o_ref):
    # x_ref : (tb, 24)  current batch tile
    # wt_ref: (24, 9)   transposed weight (canonical LHS @ RHS contraction)
    # b_ref : (1, 9)    bias
    # o_ref : (tb, 9)   output tile, already in PyTorch (B, 9) layout
    y = jnp.dot(x_ref[...], wt_ref[...], preferred_element_type=jnp.float32)
    o_ref[...] = (y + b_ref[...]).astype(o_ref.dtype)


@functools.partial(jax.jit, static_argnames=("batch_tile",))
def sin_layer_net_forward(x, w, b, *, batch_tile=DEFAULT_BATCH_TILE):
    """Forward pass of SinLayerNet.

    x: (B, 24) f32, w: (9, 24) f32 (PyTorch nn.Linear layout), b: (9,) f32.
    Returns (B, 9) f32 == x @ w.T + b.
    """
    B = x.shape[0]
    wt = jnp.transpose(w)                # (24, 9): one-time 864 B reshuffle
    b2d = b.reshape(1, OUT_FEATURES)

    if B <= SINGLE_BLOCK_MAX:
        # Single full-array block: always layout-legal (block == array dims),
        # no pipeline scaffolding; launch overhead dominates at this size.
        tb = B
    else:
        # Keep >= 2 grid steps (megacore sharding on v7x), rows/step <= tile.
        half = -(-B // 2)                       # ceil(B / 2)
        half = -(-half // 128) * 128            # round up to multiple of 128
        tb = min(batch_tile, half)

    grid = (pl.cdiv(B, tb),)   # ragged last block: Pallas masks OOB writes

    # VMEM budget from actual buffer math: x tile pads lanes 24->128 and the
    # output tile pads 9->128, each double-buffered -> ~tb KiB apiece.
    vmem_limit = int(2 * (2 * tb * 128 * 4) + (4 << 20))

    cost = pl.CostEstimate(
        flops=2 * B * IN_FEATURES * OUT_FEATURES,
        transcendentals=0,
        bytes_accessed=4 * (B * IN_FEATURES + B * OUT_FEATURES
                            + IN_FEATURES * OUT_FEATURES + OUT_FEATURES),
    )

    return pl.pallas_call(
        linear_kernel,
        out_shape=jax.ShapeDtypeStruct((B, OUT_FEATURES), jnp.float32),
        grid=grid,
        in_specs=[
            pl.BlockSpec((tb, IN_FEATURES), lambda i: (i, 0)),             # x
            pl.BlockSpec((IN_FEATURES, OUT_FEATURES), lambda i: (0, 0)),   # W.T
            pl.BlockSpec((1, OUT_FEATURES), lambda i: (0, 0)),             # b
        ],
        out_specs=pl.BlockSpec((tb, OUT_FEATURES), lambda i: (i, 0)),
        compiler_params=pltpu.CompilerParams(
            dimension_semantics=("parallel",),   # batch tiles are independent
            vmem_limit_bytes=vmem_limit,
        ),
        cost_estimate=cost,
    )(x, wt, b2d)


def init_params(key):
    # PyTorch nn.Linear default init: U(-1/sqrt(fan_in), 1/sqrt(fan_in)).
    kw, kb = jax.random.split(key)
    bound = 1.0 / jnp.sqrt(jnp.float32(IN_FEATURES))
    w = jax.random.uniform(
        kw, (OUT_FEATURES, IN_FEATURES), jnp.float32, minval=-bound, maxval=bound
    )
    b = jax.random.uniform(
        kb, (OUT_FEATURES,), jnp.float32, minval=-bound, maxval=bound
    )
    return w, b


if __name__ == "__main__":
    key = jax.random.PRNGKey(0)
    k_param, k_x, k_x2 = jax.random.split(key, 3)

    w, b = init_params(k_param)   # w: (9, 24), b: (9,)

    # Small batch consistent with the module: single full-array block path.
    B = 8
    x = jax.random.normal(k_x, (B, IN_FEATURES), dtype=jnp.float32)
    y = jax.block_until_ready(sin_layer_net_forward(x, w, b))
    y_ref = x @ w.T + b
    assert y.shape == (B, OUT_FEATURES)
    assert jnp.allclose(y, y_ref, atol=1e-5, rtol=1e-5)

    # Ragged multi-tile batch: >= 2 grid steps with a masked last block
    # (exercises the no-pad path the review asked to verify).
    B2 = 2500
    x2 = jax.random.normal(k_x2, (B2, IN_FEATURES), dtype=jnp.float32)
    y2 = jax.block_until_ready(sin_layer_net_forward(x2, w, b))
    y2_ref = x2 @ w.T + b
    assert y2.shape == (B2, OUT_FEATURES)
    assert jnp.allclose(y2, y2_ref, atol=1e-4, rtol=1e-5)

    print("KERNEL_OK")
</pallas_src>

<mosaic_0001>
module attributes {stable_mosaic.version = 11 : i64} {
  func.func @linear_kernel(%arg0: i32, %arg1: memref<8x24xf32, #tpu.memory_space<vmem>>, %arg2: memref<24x9xf32, #tpu.memory_space<vmem>>, %arg3: memref<1x9xf32, #tpu.memory_space<vmem>>, %arg4: memref<8x9xf32, #tpu.memory_space<vmem>>) attributes {dimension_semantics = [#tpu.dimension_semantics<parallel>], iteration_bounds = array<i64: 1>, scalar_prefetch = 0 : i64, scratch_operands = 0 : i64, tpu.core_type = #tpu.core_type<tc>, window_params = [{transform_indices = @transform_0, window_bounds = array<i64: 8, 24>}, {pipeline_mode = #tpu.pipeline_mode<synchronous>, transform_indices = @transform_1, window_bounds = array<i64: 24, 9>}, {pipeline_mode = #tpu.pipeline_mode<synchronous>, transform_indices = @transform_2, window_bounds = array<i64: 1, 9>}, {transform_indices = @transform_3, window_bounds = array<i64: 8, 9>}]} {
    %c0 = arith.constant 0 : index
    %c0_0 = arith.constant 0 : index
    %0 = vector.load %arg1[%c0, %c0_0] : memref<8x24xf32, #tpu.memory_space<vmem>>, vector<8x24xf32>
    %c0_1 = arith.constant 0 : index
    %c0_2 = arith.constant 0 : index
    %1 = vector.load %arg2[%c0_1, %c0_2] : memref<24x9xf32, #tpu.memory_space<vmem>>, vector<24x9xf32>
    %cst = arith.constant dense<0.000000e+00> : vector<8x9xf32>
    %2 = tpu.matmul %0, %1, %cst {dimension_numbers = #tpu.dot_dimension_numbers<[1], [0], [0], [1], [0, 0, 1, 1], [], []>} : vector<8x24xf32>, vector<24x9xf32>, vector<8x9xf32> -> vector<8x9xf32>
    %c0_3 = arith.constant 0 : index
    %c0_4 = arith.constant 0 : index
    %3 = vector.load %arg3[%c0_3, %c0_4] : memref<1x9xf32, #tpu.memory_space<vmem>>, vector<1x9xf32>
    %4 = vector.broadcast %3 : vector<1x9xf32> to vector<8x9xf32>
    %5 = arith.addf %2, %4 : vector<8x9xf32>
    %c0_5 = arith.constant 0 : index
    %c0_6 = arith.constant 0 : index
    %6 = vector.load %arg4[%c0_5, %c0_6] : memref<8x9xf32, #tpu.memory_space<vmem>>, vector<8x9xf32>
    tpu.vector_store %arg4[%c0_5, %c0_6], %5 {strides = array<i32>} : memref<8x9xf32, #tpu.memory_space<vmem>>, vector<8x9xf32>,
    return
  }
  func.func @transform_0(%arg0: i32) -> (i32, i32) {
    %c0_i32 = arith.constant 0 : i32
    %c0_i32_0 = arith.constant 0 : i32
    return %arg0, %c0_i32 : i32, i32
  }
  func.func @transform_1(%arg0: i32) -> (i32, i32) {
    %c0_i32 = arith.constant 0 : i32
    %c0_i32_0 = arith.constant 0 : i32
    %c0_i32_1 = arith.constant 0 : i32
    return %c0_i32, %c0_i32_0 : i32, i32
  }
  func.func @transform_2(%arg0: i32) -> (i32, i32) {
    %c0_i32 = arith.constant 0 : i32
    %c0_i32_0 = arith.constant 0 : i32
    %c0_i32_1 = arith.constant 0 : i32
    return %c0_i32, %c0_i32_0 : i32, i32
  }
  func.func @transform_3(%arg0: i32) -> (i32, i32) {
    %c0_i32 = arith.constant 0 : i32
    %c0_i32_0 = arith.constant 0 : i32
    return %arg0, %c0_i32 : i32, i32
  }
}

</mosaic_0001>

<llo_original>
// kernel: sin_layer_net_forward.1
$region0: #{sin_layer_net_forward.1}
  #allocation0 [shape = 'u32[]', space=smem, size = 0x4, offset = 0x4, fixed_abs, tag = 'smem constant byte address 0x4 - core index']
  #allocation1 [shape = 'u32[144,128]{1,0:T(1,128)}', space=vmem, size = 0x12000, scoped, tag = 'internal scratch']
  %s0 = inlined_call_operand.vmem [shape: f32[8,24], index: 0, kind: input, shape index: {}]
  %s1 = inlined_call_operand.vmem [shape: f32[24,9], index: 1, kind: input, shape index: {}]
  %s2 = inlined_call_operand.vmem [shape: f32[1,9], index: 2, kind: input, shape index: {}]
  %s3 = inlined_call_operand.hbm [shape: f32[8,9], index: 3, kind: output, shape index: {}]
  %s4 = sld [smem:[#allocation0]]
  $region22: #{sin_layer_net_forward.1} parent=0
    _
  %s6 = ssub.s32 1, %s4
  %s7 = scalar_select 0, %s6, %s4
  $region1: #{sin_layer_net_forward.1} parent=0
    #allocation2 [shape = 'u8[4096]{0}', space=vmem, size = 0x1000, scoped, tag = 'output window, operand 0, single buffered']
    #allocation3 [shape = 's32[1]{0}', space=sflag, size = 0x4, scoped, tag = 'scoped memory for sin_layer_net_forward.1']
    %8 = vsyncpa [#allocation3], 0
    // Predicated region
    $region2: #{sin_layer_net_forward.1} parent=1 // pred_check
      _
    $region3: #{sin_layer_net_forward.1} parent=1 // pred_check_branch
      %10 = sbr.rel (0) target = $region5
    $region4: #{sin_layer_net_forward.1} parent=1 // pred_region
      _
    $region5: #{sin_layer_net_forward.1} parent=1 // pred_fallthru
      _
    // Predicated region
    $region6: #{sin_layer_net_forward.1} parent=1 // pred_check
      _
    $region7: #{sin_layer_net_forward.1} parent=1 // pred_check_branch
      %12 = sbr.rel (0) target = $region9
    $region8: #{sin_layer_net_forward.1} parent=1 // pred_region
      _
    $region9: #{sin_layer_net_forward.1} parent=1 // pred_fallthru
      _
    // Predicated region
    $region10: #{sin_layer_net_forward.1} parent=1 // pred_check
      _
    $region11: #{sin_layer_net_forward.1} parent=1 // pred_check_branch
      %14 = sbr.rel (0) target = $region13
    $region12: #{sin_layer_net_forward.1} parent=1 // pred_region
      _
    $region13: #{sin_layer_net_forward.1} parent=1 // pred_fallthru
      _
    %v15 = vld [vmem:[%s0] sm:$0xff]
    %v16 = vld [vmem:[%s1] sm:$0xff]
    %v17 = vld [vmem:[%s1 + $0x8] sm:$0xff]
    %v18 = vld [vmem:[%s1 + $0x10] sm:$0xff]
    %v19 = vld [vmem:[%s2] sm:$0x1]
    %v21 = vlaneseq
    %v22 = vshrl.u32 %v21, 7
    %v23 = vsub.s32 0, %v22
    %v24 = vrot.slane %v19, %v23
    %vm26 = vcmask 195584
    %v28 = vsel %vm26, %v15, 0
    %30 = vmatprep.subr.mxu0 0.0
    %31 = vmatpush1.msra.mxu0 0.0
    %32 = vmatprep.subr.mxu0 0.0
    %33 = vmatpush1.msra.mxu0 0.0
    %34 = vmatprep.subr.mxu0 0.0
    %35 = vmatpush1.msra.mxu0 0.0
    %36 = vmatprep.subr.mxu0 0.0
    %37 = vmatpush1.msra.mxu0 0.0
    %38 = vmatprep.subr.mxu0 0.0
    %39 = vmatpush1.msra.mxu0 0.0
    %40 = vmatprep.subr.mxu0 0.0
    %41 = vmatpush1.msra.mxu0 0.0
    %42 = vmatprep.subr.mxu0 0.0
    %43 = vmatpush1.msra.mxu0 0.0
    %44 = vmatprep.subr.mxu0 0.0
    %45 = vmatpush1.msra.mxu0 0.0
    %46 = vmatprep.subr.mxu0 0.0
    %47 = vmatpush1.msra.mxu0 0.0
    %48 = vmatprep.subr.mxu0 0.0
    %49 = vmatpush1.msra.mxu0 0.0
    %50 = vmatprep.subr.mxu0 0.0
    %51 = vmatpush1.msra.mxu0 0.0
    %52 = vmatprep.subr.mxu0 0.0
    %53 = vmatpush1.msra.mxu0 0.0
    %54 = vmatprep.subr.mxu0 0.0
    %55 = vmatpush1.msra.mxu0 0.0
    %56 = vmatprep.subr.mxu0 0.0
    %57 = vmatpush1.msra.mxu0 %v18
    %58 = vmatprep.subr.mxu0 0.0
    %59 = vmatpush1.msra.mxu0 %v17
    %60 = vmatprep.subr.mxu0 0.0
    %61 = vmatpush1.msra.mxu0 %v16
    %62 = vmatprep.subr.mxu0 0.0
    %63 = vmatpush2.msra.mxu0 0.0
    %64 = vmatprep.subr.mxu0 0.0
    %65 = vmatpush2.msra.mxu0 0.0
    %66 = vmatprep.subr.mxu0 0.0
    %67 = vmatpush2.msra.mxu0 0.0
    %68 = vmatprep.subr.mxu0 0.0
    %69 = vmatpush2.msra.mxu0 0.0
    %70 = vmatprep.subr.mxu0 0.0
    %71 = vmatpush2.msra.mxu0 0.0
    %72 = vmatprep.subr.mxu0 0.0
    %73 = vmatpush2.msra.mxu0 0.0
    %74 = vmatprep.subr.mxu0 0.0
    %75 = vmatpush2.msra.mxu0 0.0
    %76 = vmatprep.subr.mxu0 0.0
    %77 = vmatpush2.msra.mxu0 0.0
    %78 = vmatprep.subr.mxu0 0.0
    %79 = vmatpush2.msra.mxu0 0.0
    %80 = vmatprep.subr.mxu0 0.0
    %81 = vmatpush2.msra.mxu0 0.0
    %82 = vmatprep.subr.mxu0 0.0
    %83 = vmatpush2.msra.mxu0 0.0
    %84 = vmatprep.subr.mxu0 0.0
    %85 = vmatpush2.msra.mxu0 0.0
    %86 = vmatprep.subr.mxu0 0.0
    %87 = vmatpush2.msra.mxu0 0.0
    %88 = vmatprep.subr.mxu0 0.0
    %89 = vmatpush2.msra.mxu0 0.0
    %90 = vmatprep.subr.mxu0 0.0
    %91 = vmatpush2.msra.mxu0 0.0
    %92 = vmatprep.subr.mxu0 0.0
    %93 = vmatpush2.msra.mxu0 0.0
    %94 = vmatprep.mubr.f32.mxu0 0.0
    %95 = vmatmul.mubr.f32.gmra.mxu0 %v28
    %v96 = vpop.f32.mrf.mxu0
    %v97 = vadd.f32 %v24, %v96
    %v98 = vpop.f32.mrf.mxu0
    %99 = vdwg.mxu0
    %vm100 = vcmask 72704
    %101 = vst.msk [vmem:[#allocation2] sm:$0xff] %vm100, %v97
    // Predicated region
    $region14: #{sin_layer_net_forward.1} parent=1 // pred_check
      _
    $region15: #{sin_layer_net_forward.1} parent=1 // pred_check_branch
      %103 = sbr.rel (0) target = $region17
    $region16: #{sin_layer_net_forward.1} parent=1 // pred_region
      %s105 = ssub.s32 128, 128
      %106 = vsyncadd [#allocation3], %s105
      %s108 = sshll.u32 [#allocation2], 4
      %s109 = int_to_ptr.vmem [resolvable:$true] %s108
      %111 = dma.vmem_to_hbm [thread:$0]  %s109, 128, %s3, [#allocation3]
    $region17: #{sin_layer_net_forward.1} parent=1 // pred_fallthru
      _
    // Predicated region
    $region18: #{sin_layer_net_forward.1} parent=1 // pred_check
      _
    $region19: #{sin_layer_net_forward.1} parent=1 // pred_check_branch
      %113 = sbr.rel (0) target = $region21
    $region20: #{sin_layer_net_forward.1} parent=1 // pred_region
      %114 = dma.done [#allocation3], 128
    $region21: #{sin_layer_net_forward.1} parent=1 // pred_fallthru
      _
    %115 = vsyncpa [#allocation3], 1

</llo_original>
